<compile_context>
chip_gen: v6e
topology: v6e:2x2x1
jax: 0.10.0
libtpu: 0.0.40
codegen_flags: <defaults>
</compile_context>

<pallas_src>
import jax
import jax.numpy as jnp
from jax.experimental import pallas as pl
from jax.experimental.pallas import tpu as pltpu

_MIB = 1024 * 1024


def _round_up(x, mult):
    return ((x + mult - 1) // mult) * mult


# ----------------------------- kernels --------------------------------------

def _dedicom_kernel_fullk(dg_ref, dis_ref, out_ref):
    # dg_ref:  (TM, d)  operand dtype — row tile of drug @ G'
    # dis_ref: (d, TN)  operand dtype — column tile of disease^T
    # out_ref: (TM, TN) output dtype
    rec = jnp.dot(dg_ref[...], dis_ref[...], preferred_element_type=jnp.float32)
    out_ref[...] = jax.nn.sigmoid(rec).astype(out_ref.dtype)


def _dedicom_kernel_kblock(dg_ref, dis_ref, out_ref, acc_ref):
    # dg_ref:  (TM, TK) operand dtype
    # dis_ref: (TK, TN) operand dtype
    # out_ref: (TM, TN) output dtype
    # acc_ref: (TM, TN) f32 accumulator scratch (persists across the k axis)
    k = pl.program_id(2)

    @pl.when(k == 0)
    def _():
        acc_ref[...] = jnp.zeros_like(acc_ref)

    acc_ref[...] += jnp.dot(dg_ref[...], dis_ref[...],
                            preferred_element_type=jnp.float32)

    @pl.when(k == pl.num_programs(2) - 1)
    def _():
        out_ref[...] = jax.nn.sigmoid(acc_ref[...]).astype(out_ref.dtype)


# --------------------------- tiling helpers ----------------------------------

def _hw_limits():
    """(tm_cap, tn_cap, vmem_limit_cap) sized per TPU generation."""
    try:
        vmem_cap = int(pltpu.get_tpu_info().vmem_capacity_bytes)
    except Exception:
        vmem_cap = 64 * _MIB            # conservative (v7x-sized) fallback
    if vmem_cap >= 96 * _MIB:           # v5e / v6e class (128 MiB VMEM)
        return 1024, 1024, 96 * _MIB
    return 512, 512, 48 * _MIB          # v7x class (64 MiB VMEM)


def _balanced_tile(dim, cap, mult):
    """Full dim when it fits (always layout-legal, zero waste); otherwise the
    largest multiple of `mult` <= cap that balances the last block."""
    if dim <= cap:
        return dim
    nblocks = pl.cdiv(dim, cap)
    return min(cap, max(mult, _round_up(pl.cdiv(dim, nblocks), mult)))


def _choose_tiles(m, n, d, in_itemsize, out_itemsize, tm_cap, tn_cap, budget,
                  k_tile=None):
    tm = _balanced_tile(m, tm_cap, 16)      # 16: safe sublane multiple for bf16
    tn = _balanced_tile(n, tn_cap, 128)     # lane-dense output stores

    def step_bytes(tm_, tn_, tk_):
        return (2 * (tm_ * tk_ + tk_ * tn_) * in_itemsize   # double-buffered ins
                + 2 * tm_ * tn_ * out_itemsize              # double-buffered out
                + tm_ * tn_ * 4)                            # f32 acc scratch

    if k_tile is not None:
        tk = int(k_tile)
    else:
        tk = d                               # full-K: no pad, no reduction loop
        if d > 512 and step_bytes(tm, tn, tk) > budget:
            # K-block; lands on 512 (multiple of 256 and 128) for typical big d.
            tk = _balanced_tile(d, 512, 128)

    # Shrink M/N tiles until the per-step working set fits the VMEM budget.
    while step_bytes(tm, tn, tk) > budget and (tm > 128 or tn > 128):
        if tm >= tn and tm > 128:
            tm = max(128, _round_up(tm // 2, 16))
        else:
            tn = max(128, _round_up(tn // 2, 128))
    return tm, tn, tk


# ------------------------------ wrapper ---------------------------------------

def dedicom_decoder(drug_feature, disease_feature, global_interaction,
                    local_drug, local_disease, *, operand_dtype=None,
                    out_dtype=None, k_tile=None):
    """sigmoid(drug @ diag(w_drug) @ G @ diag(w_dis) @ disease^T) -> (m, n)."""
    m, d = drug_feature.shape
    n, d2 = disease_feature.shape
    assert d == d2 and global_interaction.shape == (d, d)

    dtype = (jnp.dtype(operand_dtype) if operand_dtype is not None
             else jnp.dtype(drug_feature.dtype))
    o_dtype = jnp.dtype(out_dtype) if out_dtype is not None else dtype

    # Fold both diagonal scalings into G (d*d elementwise), then hoist the first
    # matmul out of the kernel (review option (a)) — computed exactly once.
    g_fold = (local_drug.astype(jnp.float32)[:, None]
              * global_interaction.astype(jnp.float32)
              * local_disease.astype(jnp.float32)[None, :]).astype(dtype)
    drug_g = jnp.dot(drug_feature.astype(dtype), g_fold,
                     preferred_element_type=jnp.float32).astype(dtype)   # (m, d)
    disease_t = disease_feature.T.astype(dtype)                          # (d, n)

    tm_cap, tn_cap, vmem_limit_cap = _hw_limits()
    budget = (3 * vmem_limit_cap) // 4       # headroom for Mosaic-internal scratch
    tm, tn, tk = _choose_tiles(m, n, d, dtype.itemsize, o_dtype.itemsize,
                               tm_cap, tn_cap, budget, k_tile=k_tile)

    # Pad the contraction dim only when K is blocked (zeros don't change sums).
    dp = _round_up(d, tk)
    if dp != d:
        drug_g = jnp.pad(drug_g, ((0, 0), (0, dp - d)))
        disease_t = jnp.pad(disease_t, ((0, dp - d), (0, 0)))
    nk = dp // tk
    ni = pl.cdiv(m, tm)
    nj = pl.cdiv(n, tn)

    step_bytes = (2 * (tm * tk + tk * tn) * dtype.itemsize
                  + 2 * tm * tn * o_dtype.itemsize + tm * tn * 4)
    vmem_limit = int(min(vmem_limit_cap, max(2 * step_bytes, 16 * _MIB)))

    if nk == 1:
        # drug_g row tiles read once; disease_t column tiles re-read per row tile.
        cost = pl.CostEstimate(
            flops=2 * (ni * tm) * dp * (nj * tn),
            transcendentals=(ni * tm) * (nj * tn),
            bytes_accessed=((ni * tm) * dp * dtype.itemsize
                            + ni * dp * (nj * tn) * dtype.itemsize
                            + (ni * tm) * (nj * tn) * o_dtype.itemsize))
        return pl.pallas_call(
            _dedicom_kernel_fullk,
            out_shape=jax.ShapeDtypeStruct((m, n), o_dtype),
            grid=(ni, nj),
            in_specs=[pl.BlockSpec((tm, dp), lambda i, j: (i, 0)),
                      pl.BlockSpec((dp, tn), lambda i, j: (0, j))],
            out_specs=pl.BlockSpec((tm, tn), lambda i, j: (i, j)),
            compiler_params=pltpu.CompilerParams(
                dimension_semantics=("parallel", "parallel"),
                vmem_limit_bytes=vmem_limit),
            cost_estimate=cost,
        )(drug_g, disease_t)

    # K-blocked path: bounded per-step VMEM independent of d (v7x-friendly).
    cost = pl.CostEstimate(
        flops=2 * (ni * tm) * dp * (nj * tn),
        transcendentals=(ni * tm) * (nj * tn),
        bytes_accessed=(nj * (ni * tm) * dp * dtype.itemsize      # drug_g per j
                        + ni * dp * (nj * tn) * dtype.itemsize    # disease_t per i
                        + (ni * tm) * (nj * tn) * o_dtype.itemsize))
    return pl.pallas_call(
        _dedicom_kernel_kblock,
        out_shape=jax.ShapeDtypeStruct((m, n), o_dtype),
        grid=(ni, nj, nk),
        in_specs=[pl.BlockSpec((tm, tk), lambda i, j, k: (i, k)),
                  pl.BlockSpec((tk, tn), lambda i, j, k: (k, j))],
        out_specs=pl.BlockSpec((tm, tn), lambda i, j, k: (i, j)),
        scratch_shapes=[pltpu.VMEM((tm, tn), jnp.float32)],
        compiler_params=pltpu.CompilerParams(
            dimension_semantics=("parallel", "parallel", "arbitrary"),
            vmem_limit_bytes=vmem_limit),
        cost_estimate=cost,
    )(drug_g, disease_t)


# ------------------------------ demo / check ----------------------------------

def _xavier_uniform(key, shape):
    fan_in, fan_out = shape[0], shape[1]
    bound = jnp.sqrt(6.0 / (fan_in + fan_out))
    return jax.random.uniform(key, shape, jnp.float32, -bound, bound)


def _reference(drug, disease, g, wdrug, wdis):
    rec = (drug * wdrug[None, :]) @ g @ jnp.diag(wdis) @ disease.T
    return jax.nn.sigmoid(rec)


def _make_inputs(key, m, n, d):
    k1, k2, k3, k4, k5 = jax.random.split(key, 5)
    g = _xavier_uniform(k1, (d, d))
    wdrug = _xavier_uniform(k2, (d, 1)).flatten()
    wdis = _xavier_uniform(k3, (d, 1)).flatten()
    drug = jax.random.normal(k4, (m, d), jnp.float32)
    disease = jax.random.normal(k5, (n, d), jnp.float32)
    return drug, disease, g, wdrug, wdis


if __name__ == "__main__":
    key1, key2 = jax.random.split(jax.random.PRNGKey(0))

    # Shapes consistent with the module: input_dim=32, 16 drugs, 8 diseases.
    drug, disease, g, wdrug, wdis = _make_inputs(key1, 16, 8, 32)
    ref = _reference(drug, disease, g, wdrug, wdis)

    # 1) Default path (f32 operands, f32 output): tight check.
    out = jax.block_until_ready(dedicom_decoder(drug, disease, g, wdrug, wdis))
    assert out.shape == (16, 8) and out.dtype == jnp.float32
    assert jnp.allclose(out, ref, atol=1e-5, rtol=1e-5)

    # 2) bf16 operand/output fast path (MXU-friendly per review). Looser
    #    tolerance: drug@G' intermediate and output are rounded to bf16.
    out_bf16 = jax.block_until_ready(
        dedicom_decoder(drug, disease, g, wdrug, wdis,
                        operand_dtype=jnp.bfloat16))
    assert out_bf16.dtype == jnp.bfloat16
    assert jnp.allclose(out_bf16.astype(jnp.float32), ref, atol=3e-2, rtol=3e-2)

    # 3) Exercise the K-blocked accumulator path (larger d, forced k tile) and
    #    non-tile-aligned m/n (partial / masked edge handling).
    drug2, disease2, g2, wdrug2, wdis2 = _make_inputs(key2, 24, 136, 256)
    ref2 = _reference(drug2, disease2, g2, wdrug2, wdis2)
    out2 = jax.block_until_ready(
        dedicom_decoder(drug2, disease2, g2, wdrug2, wdis2, k_tile=128))
    assert out2.shape == (24, 136)
    assert jnp.allclose(out2, ref2, atol=1e-4, rtol=1e-4)

    print("KERNEL_OK")
</pallas_src>

<mosaic_0001>
module attributes {stable_mosaic.version = 11 : i64} {
  func.func @_dedicom_kernel_fullk(%arg0: i32, %arg1: i32, %arg2: memref<16x32xf32, #tpu.memory_space<vmem>>, %arg3: memref<32x8xf32, #tpu.memory_space<vmem>>, %arg4: memref<16x8xf32, #tpu.memory_space<vmem>>) attributes {dimension_semantics = [#tpu.dimension_semantics<parallel>, #tpu.dimension_semantics<parallel>], iteration_bounds = array<i64: 1, 1>, scalar_prefetch = 0 : i64, scratch_operands = 0 : i64, tpu.core_type = #tpu.core_type<tc>, window_params = [{transform_indices = @transform_0, window_bounds = array<i64: 16, 32>}, {transform_indices = @transform_1, window_bounds = array<i64: 32, 8>}, {transform_indices = @transform_2, window_bounds = array<i64: 16, 8>}]} {
    %c0 = arith.constant 0 : index
    %c0_0 = arith.constant 0 : index
    %0 = vector.load %arg2[%c0, %c0_0] : memref<16x32xf32, #tpu.memory_space<vmem>>, vector<16x32xf32>
    %c0_1 = arith.constant 0 : index
    %c0_2 = arith.constant 0 : index
    %1 = vector.load %arg3[%c0_1, %c0_2] : memref<32x8xf32, #tpu.memory_space<vmem>>, vector<32x8xf32>
    %cst = arith.constant dense<0.000000e+00> : vector<16x8xf32>
    %2 = tpu.matmul %0, %1, %cst {dimension_numbers = #tpu.dot_dimension_numbers<[1], [0], [0], [1], [0, 0, 1, 1], [], []>} : vector<16x32xf32>, vector<32x8xf32>, vector<16x8xf32> -> vector<16x8xf32>
    %3 = arith.negf %2 : vector<16x8xf32>
    %4 = math.exp %3 : vector<16x8xf32>
    %cst_3 = arith.constant 1.000000e+00 : f32
    %5 = vector.broadcast %cst_3 : f32 to vector<16x8xf32>
    %6 = arith.addf %5, %4 : vector<16x8xf32>
    %7 = arith.divf %5, %6 : vector<16x8xf32>
    %c0_4 = arith.constant 0 : index
    %c0_5 = arith.constant 0 : index
    %8 = vector.load %arg4[%c0_4, %c0_5] : memref<16x8xf32, #tpu.memory_space<vmem>>, vector<16x8xf32>
    tpu.vector_store %arg4[%c0_4, %c0_5], %7 {strides = array<i32>} : memref<16x8xf32, #tpu.memory_space<vmem>>, vector<16x8xf32>,
    return
  }
  func.func @transform_0(%arg0: i32, %arg1: i32) -> (i32, i32) {
    %c0_i32 = arith.constant 0 : i32
    %c0_i32_0 = arith.constant 0 : i32
    return %arg0, %c0_i32 : i32, i32
  }
  func.func @transform_1(%arg0: i32, %arg1: i32) -> (i32, i32) {
    %c0_i32 = arith.constant 0 : i32
    %c0_i32_0 = arith.constant 0 : i32
    return %c0_i32, %arg1 : i32, i32
  }
  func.func @transform_2(%arg0: i32, %arg1: i32) -> (i32, i32) {
    %c0_i32 = arith.constant 0 : i32
    return %arg0, %arg1 : i32, i32
  }
}

</mosaic_0001>

<llo_original>
// kernel: tpu_custom_call.1
$region0: #{tpu_custom_call.1}
  #allocation0 [shape = 'u32[]', space=smem, size = 0x4, offset = 0x4, fixed_abs, tag = 'smem constant byte address 0x4 - core index']
  #allocation1 [shape = 'u32[144,128]{1,0:T(1,128)}', space=vmem, size = 0x12000, scoped, tag = 'internal scratch']
  %s0 = inlined_call_operand.vmem [shape: f32[16,32], index: 0, kind: input, shape index: {}]
  %s1 = inlined_call_operand.vmem [shape: f32[32,8], index: 1, kind: input, shape index: {}]
  %s2 = inlined_call_operand.vmem [shape: f32[16,8], index: 2, kind: output, shape index: {}]
  %s3 = sld [smem:[#allocation0]]
  $region18: #{tpu_custom_call.1} parent=0
    _
  %s5 = ssub.s32 1, %s3
  %s6 = scalar_select 0, %s5, %s3
  // Predicated region
  $region2: #{tpu_custom_call.1} parent=0 // pred_check
    _
  $region3: #{tpu_custom_call.1} parent=0 // pred_check_branch
    %8 = sbr.rel (0) target = $region5
  $region4: #{tpu_custom_call.1} parent=0 // pred_region
    _
  $region5: #{tpu_custom_call.1} parent=0 // pred_fallthru
    _
  // Predicated region
  $region6: #{tpu_custom_call.1} parent=0 // pred_check
    _
  $region7: #{tpu_custom_call.1} parent=0 // pred_check_branch
    %10 = sbr.rel (0) target = $region9
  $region8: #{tpu_custom_call.1} parent=0 // pred_region
    _
  $region9: #{tpu_custom_call.1} parent=0 // pred_fallthru
    _
  %v11 = vld [vmem:[%s0] sm:$0xff]
  %v12 = vld [vmem:[%s0 + $0x8] sm:$0xff]
  %v13 = vld [vmem:[%s1] sm:$0xff]
  %v14 = vld [vmem:[%s1 + $0x8] sm:$0xff]
  %v15 = vld [vmem:[%s1 + $0x10] sm:$0xff]
  %v16 = vld [vmem:[%s1 + $0x18] sm:$0xff]
  %vm17 = vcmask 261120
  %v19 = vsel %vm17, %v11, 0
  %v22 = vsel %vm17, %v12, 0
  %24 = vmatprep.subr.mxu0 0.0
  %25 = vmatpush1.msra.mxu0 0.0
  %26 = vmatprep.subr.mxu0 0.0
  %27 = vmatpush1.msra.mxu0 0.0
  %28 = vmatprep.subr.mxu0 0.0
  %29 = vmatpush1.msra.mxu0 0.0
  %30 = vmatprep.subr.mxu0 0.0
  %31 = vmatpush1.msra.mxu0 0.0
  %32 = vmatprep.subr.mxu0 0.0
  %33 = vmatpush1.msra.mxu0 0.0
  %34 = vmatprep.subr.mxu0 0.0
  %35 = vmatpush1.msra.mxu0 0.0
  %36 = vmatprep.subr.mxu0 0.0
  %37 = vmatpush1.msra.mxu0 0.0
  %38 = vmatprep.subr.mxu0 0.0
  %39 = vmatpush1.msra.mxu0 0.0
  %40 = vmatprep.subr.mxu0 0.0
  %41 = vmatpush1.msra.mxu0 0.0
  %42 = vmatprep.subr.mxu0 0.0
  %43 = vmatpush1.msra.mxu0 0.0
  %44 = vmatprep.subr.mxu0 0.0
  %45 = vmatpush1.msra.mxu0 0.0
  %46 = vmatprep.subr.mxu0 0.0
  %47 = vmatpush1.msra.mxu0 0.0
  %48 = vmatprep.subr.mxu0 0.0
  %49 = vmatpush1.msra.mxu0 %v16
  %50 = vmatprep.subr.mxu0 0.0
  %51 = vmatpush1.msra.mxu0 %v15
  %52 = vmatprep.subr.mxu0 0.0
  %53 = vmatpush1.msra.mxu0 %v14
  %54 = vmatprep.subr.mxu0 0.0
  %55 = vmatpush1.msra.mxu0 %v13
  %56 = vmatprep.subr.mxu0 0.0
  %57 = vmatpush2.msra.mxu0 0.0
  %58 = vmatprep.subr.mxu0 0.0
  %59 = vmatpush2.msra.mxu0 0.0
  %60 = vmatprep.subr.mxu0 0.0
  %61 = vmatpush2.msra.mxu0 0.0
  %62 = vmatprep.subr.mxu0 0.0
  %63 = vmatpush2.msra.mxu0 0.0
  %64 = vmatprep.subr.mxu0 0.0
  %65 = vmatpush2.msra.mxu0 0.0
  %66 = vmatprep.subr.mxu0 0.0
  %67 = vmatpush2.msra.mxu0 0.0
  %68 = vmatprep.subr.mxu0 0.0
  %69 = vmatpush2.msra.mxu0 0.0
  %70 = vmatprep.subr.mxu0 0.0
  %71 = vmatpush2.msra.mxu0 0.0
  %72 = vmatprep.subr.mxu0 0.0
  %73 = vmatpush2.msra.mxu0 0.0
  %74 = vmatprep.subr.mxu0 0.0
  %75 = vmatpush2.msra.mxu0 0.0
  %76 = vmatprep.subr.mxu0 0.0
  %77 = vmatpush2.msra.mxu0 0.0
  %78 = vmatprep.subr.mxu0 0.0
  %79 = vmatpush2.msra.mxu0 0.0
  %80 = vmatprep.subr.mxu0 0.0
  %81 = vmatpush2.msra.mxu0 0.0
  %82 = vmatprep.subr.mxu0 0.0
  %83 = vmatpush2.msra.mxu0 0.0
  %84 = vmatprep.subr.mxu0 0.0
  %85 = vmatpush2.msra.mxu0 0.0
  %86 = vmatprep.subr.mxu0 0.0
  %87 = vmatpush2.msra.mxu0 0.0
  %88 = vmatprep.mubr.f32.mxu0 0.0
  %89 = vmatmul.mubr.f32.gmra.mxu0 %v19
  %v90 = vpop.f32.mrf.mxu0
  %v91 = vadd.f32 0.0, %v90
  %v92 = vpop.f32.mrf.mxu0
  %93 = vmatprep.mubr.f32.mxu0 0.0
  %94 = vmatmul.mubr.f32.gmra.mxu0 %v22
  %v95 = vpop.f32.mrf.mxu0
  %v96 = vadd.f32 0.0, %v95
  %v97 = vpop.f32.mrf.mxu0
  %98 = vdwg.mxu0
  %v99 = vxor.u32 %v91, 2147483648
  %v100 = vxor.u32 %v96, 2147483648
  %v101 = vmul.f32 %v99, 1.442695
  %v102 = vpow.pop %v101
  %v103 = vmul.f32 %v100, 1.442695
  %v104 = vpow.pop %v103
  %v105 = vadd.f32 %v102, 1.0
  %v106 = vadd.f32 %v104, 1.0
  %v107 = vrcp.pop %v105
  %v108 = vmul.f32 1.0, %v107
  %v109 = vrcp.pop %v106
  %v110 = vmul.f32 1.0, %v109
  %vm111 = vcmask 64512
  %112 = vst.msk [vmem:[%s2] sm:$0xff] %vm111, %v108
  %113 = vst.msk [vmem:[%s2 + $0x8] sm:$0xff] %vm111, %v110
  // Predicated region
  $region10: #{tpu_custom_call.1} parent=0 // pred_check
    _
  $region11: #{tpu_custom_call.1} parent=0 // pred_check_branch
    %115 = sbr.rel (0) target = $region13
  $region12: #{tpu_custom_call.1} parent=0 // pred_region
    _
  $region13: #{tpu_custom_call.1} parent=0 // pred_fallthru
    _
  // Predicated region
  $region14: #{tpu_custom_call.1} parent=0 // pred_check
    _
  $region15: #{tpu_custom_call.1} parent=0 // pred_check_branch
    %117 = sbr.rel (0) target = $region17
  $region16: #{tpu_custom_call.1} parent=0 // pred_region
    _
  $region17: #{tpu_custom_call.1} parent=0 // pred_fallthru
    _

</llo_original>
